<compile_context>
chip_gen: v5e
topology: v5e:2x2
jax: 0.10.0
libtpu: 0.0.40
codegen_flags: <defaults>
</compile_context>

<pallas_src>
import functools
import math

import jax
import jax.numpy as jnp
from jax import lax
from jax.experimental import pallas as pl
from jax.experimental.pallas import tpu as pltpu


_HALF_LOG_2PI = 0.5 * math.log(2.0 * math.pi)
_NEG = -1.0e9          # plain Python float: must NOT be a jnp constant (Pallas
                       # rejects kernels that close over concrete arrays).


# ----------------------------------------------------------------------------
# small helpers
# ----------------------------------------------------------------------------
@functools.lru_cache(maxsize=None)
def _vmem_limit_bytes():
    """Generation-aware scoped-VMEM budget: ~3/4 of physical, capped at 96 MiB
    (v5e/v6e have 128 MiB per core, v7x only 64 MiB -> ~48 MiB budget)."""
    cap = None
    try:
        cap = getattr(pltpu.get_tpu_info(), "vmem_capacity_bytes", None)
    except Exception:
        cap = None
    if not cap:
        cap = 64 * 1024 * 1024      # conservative fallback, safe on every gen
    return int(min(cap * 3 // 4, 96 * 1024 * 1024))


def _round_up(x, m):
    return ((x + m - 1) // m) * m


def _time_tiling(t, max_tile=1024):
    """Return (T_pad, tile): tile is a multiple of 128 (lane-dense) and T_pad
    is a multiple of tile, so every BlockSpec satisfies the (8,128) rule.
    max_tile=1024 amortises the ~0.35us per-grid-step overhead on mem-bound
    kernels (per perf review)."""
    t_pad = _round_up(t, 128)
    if t_pad <= max_tile:
        return t_pad, t_pad
    return _round_up(t, max_tile), max_tile


def _pad_last(x, t_pad):
    t = x.shape[-1]
    if t_pad == t:
        return x
    pad = [(0, 0)] * (x.ndim - 1) + [(0, t_pad - t)]
    return jnp.pad(x, pad)


# ----------------------------------------------------------------------------
# Pallas kernel 1: MAS negative cross-entropy
#   neg_cent[b, t_s, t_t] = nc14[b, t_t]
#                           + sum_c(-0.5*zp^2) * s  + sum_c zp * (m*s)
#   (s = exp(-2*logs), nc14/s/m*s hoisted to the wrapper: Ts-tile invariant)
# ----------------------------------------------------------------------------
def _neg_cent_kernel(zp_ref, s_ref, ms_ref, nc14_ref, out_ref):
    zp = zp_ref[0]                                   # [C, ts_tile]  f32
    lhs1 = (-0.5 * (zp * zp)).astype(jnp.bfloat16)   # [C, ts_tile]
    lhs2 = zp.astype(jnp.bfloat16)
    # contraction over channel axis 0 of both operands -> [ts_tile, Tt_pad]
    d = lax.dot_general(lhs1, s_ref[0],
                        dimension_numbers=(((0,), (0,)), ((), ())),
                        preferred_element_type=jnp.float32)
    d = d + lax.dot_general(lhs2, ms_ref[0],
                            dimension_numbers=(((0,), (0,)), ((), ())),
                            preferred_element_type=jnp.float32)
    out_ref[0] = d + nc14_ref[0]


def compute_neg_cent(zp_pad, s_pad_bf16, ms_pad_bf16, nc14_pad, ts_tile):
    B, C, Ts_pad = zp_pad.shape
    Tt_pad = s_pad_bf16.shape[-1]
    return pl.pallas_call(
        _neg_cent_kernel,
        out_shape=jax.ShapeDtypeStruct((B, Ts_pad, Tt_pad), jnp.float32),
        grid=(B, Ts_pad // ts_tile),
        in_specs=[
            pl.BlockSpec((1, C, ts_tile), lambda b, t: (b, 0, t)),
            pl.BlockSpec((1, C, Tt_pad), lambda b, t: (b, 0, 0)),   # resident
            pl.BlockSpec((1, C, Tt_pad), lambda b, t: (b, 0, 0)),   # resident
            pl.BlockSpec((1, 1, Tt_pad), lambda b, t: (b, 0, 0)),   # resident
        ],
        out_specs=pl.BlockSpec((1, ts_tile, Tt_pad), lambda b, t: (b, t, 0)),
        compiler_params=pltpu.CompilerParams(
            dimension_semantics=("parallel", "parallel"),
            vmem_limit_bytes=_vmem_limit_bytes()),
    )(zp_pad, s_pad_bf16, ms_pad_bf16, nc14_pad)


# ----------------------------------------------------------------------------
# Pallas kernel 2: monotonic alignment search
#   forward DP with the previous value row carried in registers, direction
#   bits in VMEM scratch; backtrack writes one-hot attn rows and a compact
#   per-frame text index.
# ----------------------------------------------------------------------------
def _mas_kernel(spec_len_ref, text_len_ref, neg_ref, attn_ref, idx_ref, dir_ref):
    b = pl.program_id(0)
    ty = spec_len_ref[b]                              # valid spec length
    tx = text_len_ref[b]                              # valid text length
    _, ts_pad, tt_pad = attn_ref.shape
    col_t = lax.broadcasted_iota(jnp.int32, (1, tt_pad), 1)   # text-axis lanes
    col_s = lax.broadcasted_iota(jnp.int32, (1, ts_pad), 1)   # spec-axis lanes

    # output block: zero then fill valid rows during backtrack
    attn_ref[0] = jnp.zeros((ts_pad, tt_pad), jnp.float32)

    # ---- forward DP: value[s, x] = neg[s, x] + max(value[s-1, x], value[s-1, x-1])
    # Previous value row stays in vregs (fori carry); only the 0/1 direction
    # bits dir[s, x] = (value[s-1, x] < value[s-1, x-1]) go to VMEM for the
    # backtrack.  TODO(synk): pack dir bits (int8/bitmask) to shrink scratch
    # 4x+ for very long utterances on v7x.
    neg_fill = jnp.full((1, 1), _NEG, jnp.float32)
    row0 = jnp.where(col_t == 0, neg_ref[0, 0:1, :], _NEG)

    def fwd(s, prev_row):
        shifted = jnp.concatenate([neg_fill, prev_row[:, :-1]], axis=1)  # value[s-1, x-1]
        dir_ref[pl.ds(s, 1), :] = (prev_row < shifted).astype(jnp.float32)
        neg_row = neg_ref[0, pl.ds(s, 1), :]
        return jnp.where(col_t < tx, neg_row + jnp.maximum(prev_row, shifted), _NEG)

    lax.fori_loop(1, ty, fwd, row0)

    # ---- backtrack (reference MAS rule):
    #   shift iff j != 0 and (j == s or value[s-1, j] < value[s-1, j-1])
    # One masked reduction per step (direction bit at lane j); the one-hot row
    # written to attn is the same mask.
    def bwd(i, carry):
        j, idx_acc = carry
        s = ty - 1 - i
        onehot = (col_t == j)
        attn_ref[0, pl.ds(s, 1), :] = onehot.astype(jnp.float32)
        idx_acc = jnp.where(col_s == s, j, idx_acc)
        dir_at_j = jnp.sum(jnp.where(onehot, dir_ref[pl.ds(s, 1), :], 0.0))
        shift = (j != 0) & ((j == s) | (dir_at_j > 0.5)) & (s > 0)
        return jnp.where(shift, j - 1, j), idx_acc

    init = (tx - 1, jnp.zeros((1, ts_pad), jnp.int32))
    _, idx_row = lax.fori_loop(0, ty, bwd, init)
    idx_ref[0] = idx_row


def maximum_path(neg_cent_pad, spec_len, text_len):
    """neg_cent_pad: [B, Ts_pad, Tt_pad]
    -> (hard alignment [B, Ts_pad, Tt_pad] f32, per-frame index [B, 1, Ts_pad] i32)."""
    B, Ts_pad, Tt_pad = neg_cent_pad.shape
    grid_spec = pltpu.PrefetchScalarGridSpec(
        num_scalar_prefetch=2,
        grid=(B,),
        in_specs=[pl.BlockSpec((1, Ts_pad, Tt_pad), lambda b, sl, tl: (b, 0, 0))],
        out_specs=[
            pl.BlockSpec((1, Ts_pad, Tt_pad), lambda b, sl, tl: (b, 0, 0)),
            pl.BlockSpec((1, 1, Ts_pad), lambda b, sl, tl: (b, 0, 0)),
        ],
        scratch_shapes=[pltpu.VMEM((Ts_pad, Tt_pad), jnp.float32)],   # direction bits
    )
    return pl.pallas_call(
        _mas_kernel,
        out_shape=(jax.ShapeDtypeStruct((B, Ts_pad, Tt_pad), jnp.float32),
                   jax.ShapeDtypeStruct((B, 1, Ts_pad), jnp.int32)),
        grid_spec=grid_spec,
        compiler_params=pltpu.CompilerParams(
            dimension_semantics=("parallel",),
            vmem_limit_bytes=_vmem_limit_bytes()),
    )(spec_len.astype(jnp.int32), text_len.astype(jnp.int32), neg_cent_pad)


# ----------------------------------------------------------------------------
# Pallas kernel 3: fused two-layer 1x1 conv  (relu + mask between layers)
#   h     = relu(W1 @ x + b1) * mask
#   stats = (W2 @ h + b2) * mask
# Weights are pre-cast to bf16 outside the kernel (resident, cast-free).
# ----------------------------------------------------------------------------
def _mlp_math(x_ref, w1_ref, b1_ref, w2_ref, b2_ref, mask_ref):
    x = x_ref[0].astype(jnp.bfloat16)                 # [Cin, t_tile]
    mask = mask_ref[0]                                # [1, t_tile]
    h = jnp.dot(w1_ref[...], x, preferred_element_type=jnp.float32) + b1_ref[...]
    h = jax.nn.relu(h) * mask                         # [H, t_tile] f32
    s = jnp.dot(w2_ref[...], h.astype(jnp.bfloat16),
                preferred_element_type=jnp.float32) + b2_ref[...]
    return h, s * mask


def _encoder_mlp_kernel_hs(x_ref, w1_ref, b1_ref, w2_ref, b2_ref, mask_ref,
                           h_ref, s_ref):
    h, s = _mlp_math(x_ref, w1_ref, b1_ref, w2_ref, b2_ref, mask_ref)
    h_ref[0] = h
    s_ref[0] = s


def _encoder_mlp_kernel_s(x_ref, w1_ref, b1_ref, w2_ref, b2_ref, mask_ref, s_ref):
    _, s = _mlp_math(x_ref, w1_ref, b1_ref, w2_ref, b2_ref, mask_ref)
    s_ref[0] = s


def encoder_mlp(x, w1_bf16, b1, w2_bf16, b2, mask, return_hidden=True):
    """x: [B, Cin, T]; returns (h [B,H,T] or None, stats [B,Cout,T])."""
    B, Cin, T = x.shape
    H = w1_bf16.shape[0]
    Cout = w2_bf16.shape[0]
    T_pad, t_tile = _time_tiling(T)
    x_p = _pad_last(x, T_pad)
    mask_p = _pad_last(mask, T_pad)

    in_specs = [
        pl.BlockSpec((1, Cin, t_tile), lambda b, t: (b, 0, t)),
        pl.BlockSpec((H, Cin), lambda b, t: (0, 0)),       # resident bf16
        pl.BlockSpec((H, 1), lambda b, t: (0, 0)),
        pl.BlockSpec((Cout, H), lambda b, t: (0, 0)),      # resident bf16
        pl.BlockSpec((Cout, 1), lambda b, t: (0, 0)),
        pl.BlockSpec((1, 1, t_tile), lambda b, t: (b, 0, t)),
    ]
    cp = pltpu.CompilerParams(
        dimension_semantics=("parallel", "parallel"),
        vmem_limit_bytes=_vmem_limit_bytes())
    args = (x_p, w1_bf16, b1.reshape(H, 1), w2_bf16, b2.reshape(Cout, 1), mask_p)

    if return_hidden:
        h_p, s_p = pl.pallas_call(
            _encoder_mlp_kernel_hs,
            out_shape=(jax.ShapeDtypeStruct((B, H, T_pad), jnp.float32),
                       jax.ShapeDtypeStruct((B, Cout, T_pad), jnp.float32)),
            grid=(B, T_pad // t_tile),
            in_specs=in_specs,
            out_specs=[pl.BlockSpec((1, H, t_tile), lambda b, t: (b, 0, t)),
                       pl.BlockSpec((1, Cout, t_tile), lambda b, t: (b, 0, t))],
            compiler_params=cp,
        )(*args)
        return h_p[:, :, :T], s_p[:, :, :T]

    # enc_q discards the hidden activation: skip its HBM writeback entirely.
    s_p = pl.pallas_call(
        _encoder_mlp_kernel_s,
        out_shape=jax.ShapeDtypeStruct((B, Cout, T_pad), jnp.float32),
        grid=(B, T_pad // t_tile),
        in_specs=in_specs,
        out_specs=pl.BlockSpec((1, Cout, t_tile), lambda b, t: (b, 0, t)),
        compiler_params=cp,
    )(*args)
    return None, s_p[:, :, :T]


# ----------------------------------------------------------------------------
# host-side helpers
# ----------------------------------------------------------------------------
def sequence_mask(lengths, max_len):
    return (jnp.arange(max_len)[None, :] < lengths[:, None]).astype(jnp.float32)


def rand_slice_segments(z, lengths, segment_size, key):
    B, C, T = z.shape
    ids_str_max = jnp.maximum(lengths - segment_size + 1, 1)
    r = jax.random.uniform(key, (B,))
    ids = jnp.minimum((r * ids_str_max).astype(jnp.int32), T - segment_size)

    def slice_one(zb, i):
        return lax.dynamic_slice(zb, (0, i), (C, segment_size))

    return jax.vmap(slice_one)(z, ids), ids


# ----------------------------------------------------------------------------
# RefSynthesizerTrn (JAX/Pallas version)
# ----------------------------------------------------------------------------
class RefSynthesizerTrnPallas:
    def __init__(self, n_vocab, spec_channels, segment_size, inter_channels,
                 hidden_channels, upsample_rates, padding_idx=0, seed=0):
        self.n_vocab = n_vocab
        self.spec_channels = spec_channels
        self.segment_size = segment_size
        self.inter_channels = inter_channels
        self.hidden_channels = hidden_channels
        self.upsample_factor = int(math.prod(upsample_rates))
        self.padding_idx = padding_idx

        ks = jax.random.split(jax.random.PRNGKey(seed), 8)
        s = 0.02
        # TextEncoder stand-in params (Pallas-consumed weights pre-cast to bf16)
        self.emb = jax.random.normal(ks[0], (n_vocab, hidden_channels)) * (
            hidden_channels ** -0.5)
        self.emb = self.emb.at[padding_idx].set(0.0)
        self.w_enc = (jax.random.normal(ks[1], (hidden_channels, hidden_channels))
                      * s).astype(jnp.bfloat16)
        self.b_enc = jnp.zeros((hidden_channels,), jnp.float32)
        self.w_proj_p = (jax.random.normal(ks[2], (2 * inter_channels, hidden_channels))
                         * s).astype(jnp.bfloat16)
        self.b_proj_p = jnp.zeros((2 * inter_channels,), jnp.float32)
        # PosteriorEncoder stand-in params
        self.w_pre_q = (jax.random.normal(ks[3], (hidden_channels, spec_channels))
                        * s).astype(jnp.bfloat16)
        self.b_pre_q = jnp.zeros((hidden_channels,), jnp.float32)
        self.w_proj_q = (jax.random.normal(ks[4], (2 * inter_channels, hidden_channels))
                         * s).astype(jnp.bfloat16)
        self.b_proj_q = jnp.zeros((2 * inter_channels,), jnp.float32)
        # Duration predictor stand-in params (Cout=1 head -> plain XLA)
        self.w_dp = jax.random.normal(ks[5], (1, hidden_channels)) * s
        self.b_dp = jnp.zeros((1,), jnp.float32)
        # Generator stand-in params (Cout=1 head -> plain XLA)
        self.w_dec = jax.random.normal(ks[6], (1, inter_channels)) * s
        self.b_dec = jnp.zeros((1,), jnp.float32)

    # --- submodule stand-ins ------------------------------------------------
    def enc_p(self, text, text_len):
        # TODO(synk): real TextEncoder is a relative-attention transformer;
        # stand-in: embedding + fused (1x1 conv -> relu -> 1x1 conv) Pallas kernel.
        B, Tt = text.shape
        x = self.emb[text] * math.sqrt(self.hidden_channels)      # [B, Tt, H]
        x = jnp.transpose(x, (0, 2, 1)).astype(jnp.float32)       # [B, H, Tt]
        mask = sequence_mask(text_len, Tt)[:, None, :]            # [B, 1, Tt]
        h, stats = encoder_mlp(x, self.w_enc, self.b_enc,
                               self.w_proj_p, self.b_proj_p, mask,
                               return_hidden=True)
        m, logs = jnp.split(stats, 2, axis=1)
        return h, m, logs, mask

    def enc_q(self, spec, spec_len, key, g=None):
        # TODO(synk): real PosteriorEncoder uses a WaveNet stack; simplified.
        B, _, Ts = spec.shape
        mask = sequence_mask(spec_len, Ts)[:, None, :]
        _, stats = encoder_mlp(spec.astype(jnp.float32), self.w_pre_q, self.b_pre_q,
                               self.w_proj_q, self.b_proj_q, mask,
                               return_hidden=False)
        m, logs = jnp.split(stats, 2, axis=1)
        eps = jax.random.normal(key, m.shape)
        z = (m + eps * jnp.exp(logs)) * mask
        return z, m, logs, mask

    def flow(self, z, mask, g=None):
        # TODO(synk): real ResidualCouplingBlock (4 coupling layers + flips);
        # zero-initialised couplings reduce to identity on the masked region.
        return z * mask

    def dp(self, x, text_mask, w, g=None):
        # TODO(synk): real StochasticDurationPredictor is a normalising flow;
        # stand-in: L2 log-duration loss.  Cout=1 head kept in plain XLA --
        # an M=1 MXU matmul wastes >99% of the systolic array.
        logw_pred = (jnp.einsum('oc,bct->bot', self.w_dp, x)
                     + self.b_dp[None, :, None]) * text_mask
        logw_true = jnp.log(w + 1e-6) * text_mask
        return jnp.sum((logw_pred - logw_true) ** 2 * text_mask, axis=(1, 2))

    def dec(self, z_slice, g=None):
        # TODO(synk): real HiFi-GAN Generator (ConvTranspose + MRF resblocks);
        # stand-in: 1x1 conv + tanh, then nearest-neighbour upsample.  The
        # pointwise conv/tanh commute with the repeat, so conv runs first
        # (upsample_factor x fewer FLOPs and HBM bytes).
        y = jnp.tanh(jnp.einsum('oc,bct->bot', self.w_dec, z_slice)
                     + self.b_dec[None, :, None])
        return jnp.repeat(y, self.upsample_factor, axis=-1)

    # --- forward -------------------------------------------------------------
    def forward(self, text, text_len, spec, spec_len, rng_key=None):
        if rng_key is None:
            rng_key = jax.random.PRNGKey(0)
        k_eps, k_slice = jax.random.split(rng_key)

        x_h, mean_prior, logscale_prior, text_mask = self.enc_p(text, text_len)
        g = None  # n_speakers == 0, no ref_encoder

        z, mean_post, logscale_post, spec_mask = self.enc_q(spec, spec_len, k_eps, g=g)
        z_p = self.flow(z, spec_mask, g=g)

        # ---- MAS alignment ----
        B, C, Ts = z_p.shape
        Tt = mean_prior.shape[-1]
        Tt_pad = _round_up(Tt, 128)
        Ts_pad, ts_tile = _time_tiling(Ts)

        # Hoisted, Ts-tile-invariant prior statistics (computed once per batch
        # in XLA, fed to the kernel as resident inputs; bf16 halves residency).
        s_sq_r = jnp.exp(-2.0 * logscale_prior)                       # [B, C, Tt]
        nc14 = jnp.sum(-_HALF_LOG_2PI - logscale_prior
                       - 0.5 * (mean_prior ** 2) * s_sq_r,
                       axis=1, keepdims=True)                         # [B, 1, Tt]

        zp_pad = _pad_last(z_p, Ts_pad)
        s_pad = _pad_last(s_sq_r, Tt_pad).astype(jnp.bfloat16)
        ms_pad = _pad_last(mean_prior * s_sq_r, Tt_pad).astype(jnp.bfloat16)
        nc14_pad = _pad_last(nc14, Tt_pad)

        neg_cent_pad = compute_neg_cent(zp_pad, s_pad, ms_pad, nc14_pad, ts_tile)
        attn_pad, idx_pad = maximum_path(neg_cent_pad, spec_len, text_len)
        attn_pad = lax.stop_gradient(attn_pad)                        # torch.no_grad/detach
        attn2d = attn_pad[:, :Ts, :Tt]
        attn = attn2d[:, None]                                        # [B, 1, Ts, Tt]

        w = attn2d.sum(axis=1)[:, None, :]                            # [B, 1, Tt]
        l_length = self.dp(x_h, text_mask, w, g=g)
        l_length = l_length / jnp.sum(text_mask)

        # ---- attn-weighted prior projection ----
        # attn is one-hot per valid spec frame, so the matmul is exactly a
        # gather of the prior stats at the per-frame text index (no dense
        # O(2C*Ts*Tt) f32 matmul, no re-read of the dense attn matrix).
        idx = idx_pad[:, 0, :Ts]                                      # [B, Ts] int32
        stats = jnp.concatenate([mean_prior, logscale_prior], axis=1)  # [B, 2C, Tt]
        idx_b = jnp.broadcast_to(idx[:, None, :], (B, 2 * C, Ts))
        proj = jnp.take_along_axis(stats, idx_b, axis=2) * spec_mask   # zero invalid frames
        mean_prior_e = proj[:, :C]
        logscale_prior_e = proj[:, C:]

        z_slice, ids_slice = rand_slice_segments(z, spec_len, self.segment_size, k_slice)
        audio = self.dec(z_slice, g=g)

        return (audio, l_length, attn, ids_slice, text_mask, spec_mask,
                (z, z_p, mean_prior_e, logscale_prior_e, mean_post, logscale_post))


# ----------------------------------------------------------------------------
if __name__ == "__main__":
    key = jax.random.PRNGKey(0)
    k_text, k_spec, k_fwd = jax.random.split(key, 3)

    B = 2
    n_vocab = 40
    T_text = 8
    T_spec = 16
    spec_channels = 16
    inter_channels = 8
    hidden_channels = 32
    segment_size = 4
    upsample_rates = [2, 2]

    text = jax.random.randint(k_text, (B, T_text), 1, n_vocab)
    text_len = jnp.array([T_text, 6], dtype=jnp.int32)
    spec = jax.random.normal(k_spec, (B, spec_channels, T_spec), dtype=jnp.float32)
    spec_len = jnp.array([T_spec, 12], dtype=jnp.int32)

    model = RefSynthesizerTrnPallas(
        n_vocab=n_vocab, spec_channels=spec_channels, segment_size=segment_size,
        inter_channels=inter_channels, hidden_channels=hidden_channels,
        upsample_rates=upsample_rates)

    out = model.forward(text, text_len, spec, spec_len, rng_key=k_fwd)
    audio, l_length, attn, ids_slice, text_mask, spec_mask, extras = out
    jax.block_until_ready((audio, l_length, attn, ids_slice, extras))

    assert audio.shape == (B, 1, segment_size * 4)
    assert attn.shape == (B, 1, T_spec, T_text)
    assert l_length.shape == (B,)
    # each valid spec frame must be aligned to exactly one text token
    row_sums = attn[:, 0].sum(-1)
    assert bool(jnp.all(jnp.abs(row_sums[0, :T_spec] - 1.0) < 1e-6))
    # the alignment must be monotonically non-decreasing over spec frames
    ali = jnp.argmax(attn[0, 0, :T_spec], axis=-1)
    assert bool(jnp.all(jnp.diff(ali) >= 0))
    print("KERNEL_OK")
</pallas_src>

<mosaic_0001>
module attributes {stable_mosaic.version = 11 : i64} {
  func.func @_encoder_mlp_kernel_hs(%arg0: i32, %arg1: i32, %arg2: memref<1x32x128xf32, #tpu.memory_space<vmem>>, %arg3: memref<32x32xbf16, #tpu.memory_space<vmem>>, %arg4: memref<32x1xf32, #tpu.memory_space<vmem>>, %arg5: memref<16x32xbf16, #tpu.memory_space<vmem>>, %arg6: memref<16x1xf32, #tpu.memory_space<vmem>>, %arg7: memref<1x1x128xf32, #tpu.memory_space<vmem>>, %arg8: memref<1x32x128xf32, #tpu.memory_space<vmem>>, %arg9: memref<1x16x128xf32, #tpu.memory_space<vmem>>) attributes {dimension_semantics = [#tpu.dimension_semantics<parallel>, #tpu.dimension_semantics<parallel>], iteration_bounds = array<i64: 2, 1>, scalar_prefetch = 0 : i64, scratch_operands = 0 : i64, tpu.core_type = #tpu.core_type<tc>, window_params = [{transform_indices = @transform_0, window_bounds = array<i64: 1, 32, 128>}, {pipeline_mode = #tpu.pipeline_mode<synchronous>, transform_indices = @transform_1, window_bounds = array<i64: 32, 32>}, {pipeline_mode = #tpu.pipeline_mode<synchronous>, transform_indices = @transform_2, window_bounds = array<i64: 32, 1>}, {pipeline_mode = #tpu.pipeline_mode<synchronous>, transform_indices = @transform_3, window_bounds = array<i64: 16, 32>}, {pipeline_mode = #tpu.pipeline_mode<synchronous>, transform_indices = @transform_4, window_bounds = array<i64: 16, 1>}, {transform_indices = @transform_5, window_bounds = array<i64: 1, 1, 128>}, {transform_indices = @transform_6, window_bounds = array<i64: 1, 32, 128>}, {transform_indices = @transform_7, window_bounds = array<i64: 1, 16, 128>}]} {
    %c0 = arith.constant 0 : index
    %c0_0 = arith.constant 0 : index
    %c0_1 = arith.constant 0 : index
    %0 = vector.load %arg2[%c0, %c0_0, %c0_1] : memref<1x32x128xf32, #tpu.memory_space<vmem>>, vector<1x32x128xf32>
    %1 = vector.shape_cast %0 : vector<1x32x128xf32> to vector<32x128xf32>
    %2 = arith.truncf %1 : vector<32x128xf32> to vector<32x128xbf16>
    %c0_2 = arith.constant 0 : index
    %c0_3 = arith.constant 0 : index
    %c0_4 = arith.constant 0 : index
    %3 = vector.load %arg7[%c0_2, %c0_3, %c0_4] : memref<1x1x128xf32, #tpu.memory_space<vmem>>, vector<1x1x128xf32>
    %4 = vector.shape_cast %3 : vector<1x1x128xf32> to vector<1x128xf32>
    %c0_5 = arith.constant 0 : index
    %c0_6 = arith.constant 0 : index
    %5 = vector.load %arg3[%c0_5, %c0_6] : memref<32x32xbf16, #tpu.memory_space<vmem>>, vector<32x32xbf16>
    %cst = arith.constant dense<0.000000e+00> : vector<32x128xf32>
    %6 = tpu.matmul %5, %2, %cst {dimension_numbers = #tpu.dot_dimension_numbers<[1], [0], [0], [1], [0, 0, 1, 1], [], []>} : vector<32x32xbf16>, vector<32x128xbf16>, vector<32x128xf32> -> vector<32x128xf32>
    %c0_7 = arith.constant 0 : index
    %c0_8 = arith.constant 0 : index
    %7 = vector.load %arg4[%c0_7, %c0_8] : memref<32x1xf32, #tpu.memory_space<vmem>>, vector<32x1xf32>
    %8 = vector.broadcast %7 : vector<32x1xf32> to vector<32x128xf32>
    %9 = arith.addf %6, %8 : vector<32x128xf32>
    %cst_9 = arith.constant 0.000000e+00 : f32
    %10 = vector.broadcast %cst_9 : f32 to vector<32x128xf32>
    %11 = arith.maximumf %9, %10 : vector<32x128xf32>
    %12 = vector.broadcast %4 : vector<1x128xf32> to vector<32x128xf32>
    %13 = arith.mulf %11, %12 : vector<32x128xf32>
    %c0_10 = arith.constant 0 : index
    %c0_11 = arith.constant 0 : index
    %14 = vector.load %arg5[%c0_10, %c0_11] : memref<16x32xbf16, #tpu.memory_space<vmem>>, vector<16x32xbf16>
    %15 = arith.truncf %13 : vector<32x128xf32> to vector<32x128xbf16>
    %cst_12 = arith.constant dense<0.000000e+00> : vector<16x128xf32>
    %16 = tpu.matmul %14, %15, %cst_12 {dimension_numbers = #tpu.dot_dimension_numbers<[1], [0], [0], [1], [0, 0, 1, 1], [], []>} : vector<16x32xbf16>, vector<32x128xbf16>, vector<16x128xf32> -> vector<16x128xf32>
    %c0_13 = arith.constant 0 : index
    %c0_14 = arith.constant 0 : index
    %17 = vector.load %arg6[%c0_13, %c0_14] : memref<16x1xf32, #tpu.memory_space<vmem>>, vector<16x1xf32>
    %18 = vector.broadcast %17 : vector<16x1xf32> to vector<16x128xf32>
    %19 = arith.addf %16, %18 : vector<16x128xf32>
    %20 = vector.broadcast %4 : vector<1x128xf32> to vector<16x128xf32>
    %21 = arith.mulf %19, %20 : vector<16x128xf32>
    %c0_15 = arith.constant 0 : index
    %c0_16 = arith.constant 0 : index
    %c0_17 = arith.constant 0 : index
    %22 = vector.load %arg8[%c0_15, %c0_16, %c0_17] : memref<1x32x128xf32, #tpu.memory_space<vmem>>, vector<1x32x128xf32>
    %23 = vector.shape_cast %22 : vector<1x32x128xf32> to vector<32x128xf32>
    %24 = vector.shape_cast %13 : vector<32x128xf32> to vector<1x32x128xf32>
    tpu.vector_store %arg8[%c0_15, %c0_16, %c0_17], %24 {strides = array<i32>} : memref<1x32x128xf32, #tpu.memory_space<vmem>>, vector<1x32x128xf32>,
    %c0_18 = arith.constant 0 : index
    %c0_19 = arith.constant 0 : index
    %c0_20 = arith.constant 0 : index
    %25 = vector.load %arg9[%c0_18, %c0_19, %c0_20] : memref<1x16x128xf32, #tpu.memory_space<vmem>>, vector<1x16x128xf32>
    %26 = vector.shape_cast %25 : vector<1x16x128xf32> to vector<16x128xf32>
    %27 = vector.shape_cast %21 : vector<16x128xf32> to vector<1x16x128xf32>
    tpu.vector_store %arg9[%c0_18, %c0_19, %c0_20], %27 {strides = array<i32>} : memref<1x16x128xf32, #tpu.memory_space<vmem>>, vector<1x16x128xf32>,
    return
  }
  func.func @transform_0(%arg0: i32, %arg1: i32) -> (i32, i32, i32) {
    %c0_i32 = arith.constant 0 : i32
    %c0_i32_0 = arith.constant 0 : i32
    return %arg0, %c0_i32, %arg1 : i32, i32, i32
  }
  func.func @transform_1(%arg0: i32, %arg1: i32) -> (i32, i32) {
    %c0_i32 = arith.constant 0 : i32
    %c0_i32_0 = arith.constant 0 : i32
    %c0_i32_1 = arith.constant 0 : i32
    return %c0_i32, %c0_i32_0 : i32, i32
  }
  func.func @transform_2(%arg0: i32, %arg1: i32) -> (i32, i32) {
    %c0_i32 = arith.constant 0 : i32
    %c0_i32_0 = arith.constant 0 : i32
    %c0_i32_1 = arith.constant 0 : i32
    return %c0_i32, %c0_i32_0 : i32, i32
  }
  func.func @transform_3(%arg0: i32, %arg1: i32) -> (i32, i32) {
    %c0_i32 = arith.constant 0 : i32
    %c0_i32_0 = arith.constant 0 : i32
    %c0_i32_1 = arith.constant 0 : i32
    return %c0_i32, %c0_i32_0 : i32, i32
  }
  func.func @transform_4(%arg0: i32, %arg1: i32) -> (i32, i32) {
    %c0_i32 = arith.constant 0 : i32
    %c0_i32_0 = arith.constant 0 : i32
    %c0_i32_1 = arith.constant 0 : i32
    return %c0_i32, %c0_i32_0 : i32, i32
  }
  func.func @transform_5(%arg0: i32, %arg1: i32) -> (i32, i32, i32) {
    %c0_i32 = arith.constant 0 : i32
    %c0_i32_0 = arith.constant 0 : i32
    return %arg0, %c0_i32, %arg1 : i32, i32, i32
  }
  func.func @transform_6(%arg0: i32, %arg1: i32) -> (i32, i32, i32) {
    %c0_i32 = arith.constant 0 : i32
    %c0_i32_0 = arith.constant 0 : i32
    return %arg0, %c0_i32, %arg1 : i32, i32, i32
  }
  func.func @transform_7(%arg0: i32, %arg1: i32) -> (i32, i32, i32) {
    %c0_i32 = arith.constant 0 : i32
    %c0_i32_0 = arith.constant 0 : i32
    return %arg0, %c0_i32, %arg1 : i32, i32, i32
  }
}

</mosaic_0001>

<llo_original>
// kernel: tpu_custom_call.1
$region0: #{tpu_custom_call.1}
  #allocation0 [shape = 'u32[]', space=smem, size = 0x4, offset = 0x4, fixed_abs, tag = 'smem constant byte address 0x4 - core index']
  #allocation1 [shape = 'u32[72,128]{1,0:T(1,128)}', space=vmem, size = 0x9000, scoped, tag = 'internal scratch']
  %s0 = inlined_call_operand.hbm [shape: f32[2,32,128], index: 0, kind: input, shape index: {}]
  %s1 = inlined_call_operand.vmem [shape: bf16[32,32], index: 1, kind: input, shape index: {}]
  %s2 = inlined_call_operand.vmem [shape: f32[32,1], index: 2, kind: input, shape index: {}]
  %s3 = inlined_call_operand.vmem [shape: bf16[16,32], index: 3, kind: input, shape index: {}]
  %s4 = inlined_call_operand.vmem [shape: f32[16,1], index: 4, kind: input, shape index: {}]
  %s5 = inlined_call_operand.vmem [shape: f32[2,1,128], index: 5, kind: input, shape index: {}]
  %s6 = inlined_call_operand.hbm [shape: f32[2,32,128], index: 6, kind: output, shape index: {0}]
  %s7 = inlined_call_operand.hbm [shape: f32[2,16,128], index: 7, kind: output, shape index: {1}]
  %8 = xla_tuple %s6, %s7
  %s9 = sld [smem:[#allocation0]]
  $region69: #{tpu_custom_call.1} parent=0
    _
  %s11 = ssub.s32 1, %s9
  %s12 = scalar_select 0, %s11, %s9
  $region1: #{tpu_custom_call.1} parent=0
    #allocation2 [shape = 'u8[32768]{0}', space=vmem, size = 0x8000, scoped, tag = 'input window, operand 0']
    #allocation3 [shape = 's32[2]{0}', space=sflag, size = 0x8, scoped, tag = 'scoped memory for tpu_custom_call.1']
    #allocation4 [shape = 's32[2]{0}', space=sflag, size = 0x8, scoped, tag = 'scoped memory for tpu_custom_call.1']
    #allocation5 [shape = 'u8[32768]{0}', space=vmem, size = 0x8000, scoped, tag = 'output window, operand 0']
    #allocation6 [shape = 'u8[16384]{0}', space=vmem, size = 0x4000, scoped, tag = 'output window, operand 1']
    #allocation7 [shape = 's32[2]{0}', space=sflag, size = 0x8, scoped, tag = 'scoped memory for tpu_custom_call.1']
    %13 = vsyncpa [#allocation3], 0
    %s14 = scalar_lea.sflag [#allocation3], 1
    %15 = vsyncpa %s14, 0
    %16 = vsyncpa [#allocation4], 0
    %s17 = scalar_lea.sflag [#allocation4], 1
    %18 = vsyncpa %s17, 0
    %19 = vsyncpa [#allocation7], 0
    %s20 = scalar_lea.sflag [#allocation7], 1
    %21 = vsyncpa %s20, 0
    loop: start=0, step=1, limit=4
    $region2: #{tpu_custom_call.1} parent=1 // loop_pre_header
      _
    $region3: #{tpu_custom_call.1} parent=1 // loop_header
      %s23 = sphi 0, %s27
      %p24 = scmp.ge.s32.totalorder %s23, 4
      %s30 = sphi 0, %s42
      %s31 = sphi 0, %s38
      %s32 = sphi 0, %s30
      %s33 = sphi 0, %s31
      %s34 = sphi 0, %s32
      %s35 = sphi 0, %s33
      %s47 = sphi 0, %s49
      %s50 = sphi 0, %s47
      %s51 = sphi 0, %s50
      %s67 = sphi 0, %s51
      %s71 = sphi 0, %s71
      %s73 = sphi 0, %s71
      %s74 = sphi 0, %s73
      %s88 = sphi 0, %s74
      %s92 = sphi 0, %s92
      %s94 = sphi 0, %s92
      %s95 = sphi 0, %s94
      %s109 = sphi 0, %s95
      %s113 = sphi 0, %s113
      %s115 = sphi 0, %s113
      %s116 = sphi 0, %s115
      %s130 = sphi 0, %s116
      %s134 = sphi 0, %s134
      %s136 = sphi 0, %s134
      %s137 = sphi 0, %s136
      %s151 = sphi 0, %s137
      %s159 = sphi 0, %s161
      %s162 = sphi 0, %s159
      %s163 = sphi 0, %s162
      %s179 = sphi 0, %s163
      %s187 = sphi 0, %s189
      %s190 = sphi 0, %s187
      %s191 = sphi 0, %s190
      %s207 = sphi 0, %s191
      %s215 = sphi 0, %s217
      %s218 = sphi 0, %s215
      %s219 = sphi 0, %s218
      %s235 = sphi 0, %s219
    $region4: #{tpu_custom_call.1} parent=1 // loop_header_branch
      %26 = sbr.rel (%p24) target = $region8
    $region5: #{tpu_custom_call.1} parent=1 // loop_body
      %s28 = ssub.s32 %s23, 1
      %s29 = ssub.s32 %s23, 2
      %s36 = sadd.s32 1, %s31
      %p37 = scmp.ge.s32.totalorder %s36, 1
      %s38 = scalar_select %p37, 0, %s36
      %s39 = sadd.s32 1, %s30
      %s40 = scalar_select %p37, %s39, %s30
      %p41 = scmp.ge.s32.totalorder %s40, 2
      %s42 = scalar_select %p41, 0, %s40
      %s43 = ssub.s32 %s30, %s42
      %s44 = ssub.s32 %s31, %s38
      %s45 = sor.u32 %s43, %s44
      %p46 = scmp.eq.s32.totalorder %s45, 0
      %s48 = sadd.s32 %s47, 1
      %s49 = scalar_select %p46, %s47, %s48
      %p52 = pneg %p46
      %p53 = scmp.eq.s32.totalorder %s23, 1
      %p54 = por %p52, %p53
      %p55 = scmp.ne.s32.totalorder %s47, %s50
      %p56 = scmp.eq.s32.totalorder %s23, 0
      %p57 = por %p55, %p56
      %p58 = scmp.ne.s32.totalorder %s47, %s50
      %p59 = scmp.eq.s32.totalorder %s28, 1
      %p60 = por %p58, %p59
      %p61 = scmp.ne.s32.totalorder %s50, %s51
      %p62 = scmp.eq.s32.totalorder %s28, 0
      %p63 = por %p61, %p62
      %p64 = scmp.ne.s32.totalorder %s50, %s51
      %p65 = scmp.eq.s32.totalorder %s29, 1
      %p66 = por %p64, %p65
      %p68 = scmp.ne.s32.totalorder %s51, %s67
      %p69 = scmp.eq.s32.totalorder %s29, 0
      %p70 = por %p68, %p69
      %s72 = sadd.s32 %s71, 1
      %p75 = scmp.eq.s32.totalorder %s23, 1
      %p76 = scmp.ne.s32.totalorder %s71, %s73
      %p77 = scmp.eq.s32.totalorder %s23, 0
      %p78 = por %p76, %p77
      %p79 = scmp.ne.s32.totalorder %s71, %s73
      %p80 = scmp.eq.s32.totalorder %s28, 1
      %p81 = por %p79, %p80
      %p82 = scmp.ne.s32.totalorder %s73, %s74
      %p83 = scmp.eq.s32.totalorder %s28, 0
      %p84 = por %p82, %p83
      %p85 = scmp.ne.s32.totalorder %s73, %s74
      %p86 = scmp.eq.s32.totalorder %s29, 1
      %p87 = por %p85, %p86
      %p89 = scmp.ne.s32.totalorder %s74, %s88
      %p90 = scmp.eq.s32.totalorder %s29, 0
      %p91 = por %p89, %p90
      %s93 = sadd.s32 %s92, 1
      %p96 = scmp.eq.s32.totalorder %s23, 1
      %p97 = scmp.ne.s32.totalorder %s92, %s94
      %p98 = scmp.eq.s32.totalorder %s23, 0
      %p99 = por %p97, %p98
      %p100 = scmp.ne.s32.totalorder %s92, %s94
      %p101 = scmp.eq.s32.totalorder %s28, 1
      %p102 = por %p100, %p101
      %p103 = scmp.ne.s32.totalorder %s94, %s95
      %p104 = scmp.eq.s32.totalorder %s28, 0
      %p105 = por %p103, %p104
      %p106 = scmp.ne.s32.totalorder %s94, %s95
      %p107 = scmp.eq.s32.totalorder %s29, 1
      %p108 = por %p106, %p107
      %p110 = scmp.ne.s32.totalorder %s95, %s109
      %p111 = scmp.eq.s32.totalorder %s29, 0
      %p112 = por %p110, %p111
      %s114 = sadd.s32 %s113, 1
      %p117 = scmp.eq.s32.totalorder %s23, 1
      %p118 = scmp.ne.s32.totalorder %s113, %s115
      %p119 = scmp.eq.s32.totalorder %s23, 0
      %p120 = por %p118, %p119
      %p121 = scmp.ne.s32.totalorder %s113, %s115
      %p122 = scmp.eq.s32.totalorder %s28, 1
      %p123 = por %p121, %p122
      %p124 = scmp.ne.s32.totalorder %s115, %s116
      %p125 = scmp.eq.s32.totalorder %s28, 0
      %p126 = por %p124, %p125
      %p127 = scmp.ne.s32.totalorder %s115, %s116
      %p128 = scmp.eq.s32.totalorder %s29, 1
      %p129 = por %p127, %p128
      %p131 = scmp.ne.s32.totalorder %s116, %s130
      %p132 = scmp.eq.s32.totalorder %s29, 0
      %p133 = por %p131, %p132
      %s135 = sadd.s32 %s134, 1
      %p138 = scmp.eq.s32.totalorder %s23, 1
      %p139 = scmp.ne.s32.totalorder %s134, %s136
      %p140 = scmp.eq.s32.totalorder %s23, 0
      %p141 = por %p139, %p140
      %p142 = scmp.ne.s32.totalorder %s134, %s136
      %p143 = scmp.eq.s32.totalorder %s28, 1
      %p144 = por %p142, %p143
      %p145 = scmp.ne.s32.totalorder %s136, %s137
      %p146 = scmp.eq.s32.totalorder %s28, 0
      %p147 = por %p145, %p146
      %p148 = scmp.ne.s32.totalorder %s136, %s137
      %p149 = scmp.eq.s32.totalorder %s29, 1
      %p150 = por %p148, %p149
      %p152 = scmp.ne.s32.totalorder %s137, %s151
      %p153 = scmp.eq.s32.totalorder %s29, 0
      %p154 = por %p152, %p153
      %s155 = ssub.s32 %s30, %s42
      %s156 = ssub.s32 %s31, %s38
      %s157 = sor.u32 %s155, %s156
      %p158 = scmp.eq.s32.totalorder %s157, 0
      %s160 = sadd.s32 %s159, 1
      %s161 = scalar_select %p158, %s159, %s160
      %p164 = pneg %p158
      %p165 = scmp.eq.s32.totalorder %s23, 1
      %p166 = por %p164, %p165
      %p167 = scmp.ne.s32.totalorder %s159, %s162
      %p168 = scmp.eq.s32.totalorder %s23, 0
      %p169 = por %p167, %p168
      %p170 = scmp.ne.s32.totalorder %s159, %s162
      %p171 = scmp.eq.s32.totalorder %s28, 1
      %p172 = por %p170, %p171
      %p173 = scmp.ne.s32.totalorder %s162, %s163
      %p174 = scmp.eq.s32.totalorder %s28, 0
      %p175 = por %p173, %p174
      %p176 = scmp.ne.s32.totalorder %s162, %s163
      %p177 = scmp.eq.s32.totalorder %s29, 1
      %p178 = por %p176, %p177
      %p180 = scmp.ne.s32.totalorder %s163, %s179
      %p181 = scmp.eq.s32.totalorder %s29, 0
      %p182 = por %p180, %p181
      %s183 = ssub.s32 %s30, %s42
      %s184 = ssub.s32 %s31, %s38
      %s185 = sor.u32 %s183, %s184
      %p186 = scmp.eq.s32.totalorder %s185, 0
      %s188 = sadd.s32 %s187, 1
      %s189 = scalar_select %p186, %s187, %s188
      %p192 = pneg %p186
      %p193 = scmp.eq.s32.totalorder %s23, 1
      %p194 = por %p192, %p193
      %p195 = scmp.ne.s32.totalorder %s187, %s190
      %p196 = scmp.eq.s32.totalorder %s23, 0
      %p197 = por %p195, %p196
      %p198 = scmp.ne.s32.totalorder %s187, %s190
      %p199 = scmp.eq.s32.totalorder %s28, 1
      %p200 = por %p198, %p199
      %p201 = scmp.ne.s32.totalorder %s190, %s191
      %p202 = scmp.eq.s32.totalorder %s28, 0
      %p203 = por %p201, %p202
      %p204 = scmp.ne.s32.totalorder %s190, %s191
      %p205 = scmp.eq.s32.totalorder %s29, 1
      %p206 = por %p204, %p205
      %p208 = scmp.ne.s32.totalorder %s191, %s207
      %p209 = scmp.eq.s32.totalorder %s29, 0
      %p210 = por %p208, %p209
      %s211 = ssub.s32 %s30, %s42
      %s212 = ssub.s32 %s31, %s38
      %s213 = sor.u32 %s211, %s212
      %p214 = scmp.eq.s32.totalorder %s213, 0
      %s216 = sadd.s32 %s215, 1
      %s217 = scalar_select %p214, %s215, %s216
      %p220 = pneg %p214
      %p221 = scmp.eq.s32.totalorder %s23, 1
      %p222 = por %p220, %p221
      %p223 = scmp.ne.s32.totalorder %s215, %s218
      %p224 = scmp.eq.s32.totalorder %s23, 0
      %p225 = por %p223, %p224
      %p226 = scmp.ne.s32.totalorder %s215, %s218
      %p227 = scmp.eq.s32.totalorder %s28, 1
      %p228 = por %p226, %p227
      %p229 = scmp.ne.s32.totalorder %s218, %s219
      %p230 = scmp.eq.s32.totalorder %s28, 0
      %p231 = por %p229, %p230
      %p232 = scmp.ne.s32.totalorder %s218, %s219
      %p233 = scmp.eq.s32.totalorder %s29, 1
      %p234 = por %p232, %p233
      %p236 = scmp.ne.s32.totalorder %s219, %s235
      %p237 = scmp.eq.s32.totalorder %s29, 0
      %p238 = por %p236, %p237
      %p239 = scmp.le.s32.totalorder 1, %s23
      %p240 = scmp.lt.s32.totalorder %s23, 3
      %p241 = pnand %p239, %p240
      %p242 = pneg %p241
      // Predicated region
      $region9: #{tpu_custom_call.1} parent=5 // pred_check
        _
      $region10: #{tpu_custom_call.1} parent=5 // pred_check_branch
        %244 = sbr.rel (%p241) target = $region12
      $region11: #{tpu_custom_call.1} parent=5 // pred_region
        %s245 = ssub.s32 %s23, 1
        // Predicated region
        $region13: #{tpu_custom_call.1} parent=11 // pred_check
          %p246 = pneg %p84
        $region14: #{tpu_custom_call.1} parent=11 // pred_check_branch
          %248 = sbr.rel (%p246) target = $region16
        $region15: #{tpu_custom_call.1} parent=11 // pred_region
          _
        $region16: #{tpu_custom_call.1} parent=11 // pred_fallthru
          _
        // Predicated region
        $region17: #{tpu_custom_call.1} parent=11 // pred_check
          %p249 = pneg %p105
        $region18: #{tpu_custom_call.1} parent=11 // pred_check_branch
          %251 = sbr.rel (%p249) target = $region20
        $region19: #{tpu_custom_call.1} parent=11 // pred_region
          _
        $region20: #{tpu_custom_call.1} parent=11 // pred_fallthru
          _
        // Predicated region
        $region21: #{tpu_custom_call.1} parent=11 // pred_check
          %p252 = pneg %p126
        $region22: #{tpu_custom_call.1} parent=11 // pred_check_branch
          %254 = sbr.rel (%p252) target = $region24
        $region23: #{tpu_custom_call.1} parent=11 // pred_region
          _
        $region24: #{tpu_custom_call.1} parent=11 // pred_fallthru
          _
        // Predicated region
        $region25: #{tpu_custom_call.1} parent=11 // pred_check
          %p255 = pneg %p147
        $region26: #{tpu_custom_call.1} parent=11 // pred_check_branch
          %257 = sbr.rel (%p255) target = $region28
        $region27: #{tpu_custom_call.1} parent=11 // pred_region
          _
        $region28: #{tpu_custom_call.1} parent=11 // pred_fallthru
          _
      $region12: #{tpu_custom_call.1} parent=5 // pred_fallthru
        _
      %p258 = scmp.lt.s32.totalorder %s23, 2
      // Predicated region
      $region29: #{tpu_custom_call.1} parent=5 // pred_check
        %p259 = pneg %p258
      $region30: #{tpu_custom_call.1} parent=5 // pred_check_branch
        %261 = sbr.rel (%p259) target = $region32
      $region31: #{tpu_custom_call.1} parent=5 // pred_region
        // Predicated region
        $region33: #{tpu_custom_call.1} parent=31 // pred_check
          %p262 = pneg %p57
        $region34: #{tpu_custom_call.1} parent=31 // pred_check_branch
          %264 = sbr.rel (%p262) target = $region36
        $region35: #{tpu_custom_call.1} parent=31 // pred_region
          %s265 = sand.u32 %s47, 1
          %s266 = scalar_lea.sflag [#allocation3], %s265
          %s267 = sand.u32 %s47, 1
          %s268 = smul.addr %s267, 32
          %s269 = scalar_lea.vmem [#allocation2], %s268
          %271 = vsyncadd %s266, 0
          %s272 = smul.addr %s30, 4
          %s273 = sadd.s32 %s31, %s272
          %s274 = smul.addr %s273, 8
          %s275 = scalar_lea.hbm %s0, %s274
          %s276 = sshll.u32 %s275, 4
          %s277 = int_to_ptr.hbm [resolvable:$true] %s276
          %s278 = sshll.u32 %s269, 4
          %s279 = int_to_ptr.vmem [resolvable:$true] %s278
          %284 = dma.hbm_to_vmem [thread:$0]  %s277, 512, %s279, %s266, 128, 128, 8
        $region36: #{tpu_custom_call.1} parent=31 // pred_fallthru
          _
        // Predicated region
        $region37: #{tpu_custom_call.1} parent=31 // pred_check
          %p285 = pneg %p169
        $region38: #{tpu_custom_call.1} parent=31 // pred_check_branch
          %287 = sbr.rel (%p285) target = $region40
        $region39: #{tpu_custom_call.1} parent=31 // pred_region
          %p288 = scmp.lt.s32.totalorder %s30, 1
          %s289 = scalar_select %p288, %s30, 1
          %p290 = scmp.lt.s32.totalorder %s31, 0
          %s291 = scalar_select %p290, %s31, 0
          %s292 = sadd.s32 %s291, %s289
          %s293 = scalar_lea.vmem %s5, %s292
        $region40: #{tpu_custom_call.1} parent=31 // pred_fallthru
          _
      $region32: #{tpu_custom_call.1} parent=5 // pred_fallthru
        _
      %p294 = scmp.le.s32.totalorder 1, %s23
      %p295 = scmp.lt.s32.totalorder %s23, 3
      %p296 = pnand %p294, %p295
      %p297 = pneg %p296
      // Predicated region
      $region41: #{tpu_custom_call.1} parent=5 // pred_check
        _
      $region42: #{tpu_custom_call.1} parent=5 // pred_check_branch
        %299 = sbr.rel (%p296) target = $region44
      $region43: #{tpu_custom_call.1} parent=5 // pred_region
        %s300 = ssub.s32 %s23, 1
        %s301 = sand.u32 %s50, 1
        %s302 = scalar_lea.sflag [#allocation3], %s301
        %s303 = sand.u32 %s50, 1
        %s304 = smul.addr %s303, 32
        %s305 = scalar_lea.vmem [#allocation2], %s304
        // Predicated region
        $region45: #{tpu_custom_call.1} parent=43 // pred_check
          %p306 = pneg %p63
        $region46: #{tpu_custom_call.1} parent=43 // pred_check_branch
          %308 = sbr.rel (%p306) target = $region48
        $region47: #{tpu_custom_call.1} parent=43 // pred_region
          %310 = dma.done %s302, 512
        $region48: #{tpu_custom_call.1} parent=43 // pred_fallthru
          _
        %s311 = sand.u32 %s50, 1
        %s312 = scalar_lea.sflag [#allocation3], %s311
        %s313 = sand.u32 %s50, 1
        %s314 = smul.addr %s313, 32
        %s315 = scalar_lea.vmem [#allocation2], %s314
        %p316 = pneg %p63
        %p317 = pneg %p60
        %p318 = pneg %p84
        %p319 = pneg %p81
        %p320 = pneg %p105
        %p321 = pneg %p102
        %p322 = pneg %p126
        %p323 = pneg %p123
        %p324 = pneg %p147
        %p325 = pneg %p144
        %p326 = scmp.lt.s32.totalorder %s32, 1
        %s327 = scalar_select %p326, %s32, 1
        %p328 = scmp.lt.s32.totalorder %s33, 0
        %s329 = scalar_select %p328, %s33, 0
        %s330 = sadd.s32 %s329, %s327
        %s331 = scalar_lea.vmem %s5, %s330
        %p332 = pneg %p175
        %p333 = pneg %p172
        %p334 = pneg %p203
        %p335 = pneg %p200
        %s336 = sand.u32 %s190, 1
        %s337 = scalar_lea.sflag [#allocation4], %s336
        %s338 = sand.u32 %s190, 1
        %s339 = smul.addr %s338, 32
        %s340 = scalar_lea.vmem [#allocation5], %s339
        %p341 = pneg %p231
        %p342 = pneg %p228
        %s343 = sand.u32 %s218, 1
        %s344 = scalar_lea.sflag [#allocation7], %s343
        %s345 = sand.u32 %s218, 1
        %s346 = smul.addr %s345, 16
        %s347 = scalar_lea.vmem [#allocation6], %s346
        %p348 = scmp.lt.s32.totalorder %s32, 1
        %s349 = scalar_select %p348, %s32, 1
        %p350 = scmp.lt.s32.totalorder %s33, 0
        %s351 = scalar_select %p350, %s33, 0
        %s352 = sadd.s32 %s351, %s349
        %s353 = scalar_lea.vmem %s5, %s352
        %v355 = vld [vmem:[%s305] sm:$0xff]
        %v356 = vld [vmem:[%s305 + $0x8] sm:$0xff]
        %v357 = vld [vmem:[%s305 + $0x10] sm:$0xff]
        %v358 = vld [vmem:[%s305 + $0x18] sm:$0xff]
        %v359 = vpack.c.bf16 %v356, %v355
        %v360 = vpack.c.bf16 %v358, %v357
        %v361 = vld [vmem:[%s353] sm:$0x1]
        %v362 = vld [vmem:[%s1] sm:$0xf]
        %v363 = vld [vmem:[%s1 + $0x4] sm:$0xf]
        %v364 = vld [vmem:[%s1 + $0x8] sm:$0xf]
        %v365 = vld [vmem:[%s1 + $0xc] sm:$0xf]
        %v366 = vld [vmem:[%s2] sm:$0xff]
        %v367 = vld [vmem:[%s2 + $0x8] sm:$0xff]
        %v368 = vld [vmem:[%s2 + $0x10] sm:$0xff]
        %v369 = vld [vmem:[%s2 + $0x18] sm:$0xff]
        %371 = vset.pattern.permute.xlu0 0
        %372 = vperm.xlu0 %371, %v366
        %v373 = vpop.permute.xlu0 %372
        %376 = vset.pattern.permute.xlu0 0
        %377 = vperm.xlu0 %376, %v367
        %v378 = vpop.permute.xlu0 %377
        %381 = vset.pattern.permute.xlu0 0
        %382 = vperm.xlu0 %381, %v368
        %v383 = vpop.permute.xlu0 %382
        %386 = vset.pattern.permute.xlu0 0
        %387 = vperm.xlu0 %386, %v369
        %v388 = vpop.permute.xlu0 %387
        %v394 = vunpack.c.l.b16 %v362
        %v395 = vunpack.c.l.b16 %v363
        %v396 = vunpack.c.l.b16 %v364
        %v397 = vunpack.c.l.b16 %v365
        %v398 = vpack.c.b16 %v395, %v394
        %v399 = vpack.c.b16 %v397, %v396
        %vm400 = vcmask 261120
        %v402 = vsel %vm400, %v398, 0
        %v405 = vsel %vm400, %v399, 0
        %407 = vmatpush.bf16.msra.mxu0 0
        %408 = vmatpush.bf16.msra.mxu0 0
        %409 = vmatpush.bf16.msra.mxu0 0
        %410 = vmatpush.bf16.msra.mxu0 0
        %411 = vmatpush.bf16.msra.mxu0 0
        %412 = vmatpush.bf16.msra.mxu0 0
        %413 = vmatpush.bf16.msra.mxu0 %v360
        %414 = vmatpush.bf16.msra.mxu0 %v359
        %415 = vmatmul.bf16.gmra.mxu0 %v402
        %v416 = vpop.f32.mrf.mxu0
        %v417 = vadd.f32 %v373, %v416
        %v418 = vpop.f32.mrf.mxu0
        %v419 = vadd.f32 %v378, %v418
        %420 = vmatmul.bf16.gmra.mxu0 %v405
        %v421 = vpop.f32.mrf.mxu0
        %v422 = vadd.f32 %v383, %v421
        %v423 = vpop.f32.mrf.mxu0
        %v424 = vadd.f32 %v388, %v423
        %425 = vdwg.mxu0
        %v426 = vmax.f32 %v417, 0.0
        %v427 = vmax.f32 %v419, 0.0
        %v428 = vmax.f32 %v422, 0.0
        %v429 = vmax.f32 %v424, 0.0
        %v431 = vperm.slane %v361, 0
        %v433 = vmul.f32 %v426, %v431
        %v434 = vmul.f32 %v427, %v431
        %v435 = vmul.f32 %v428, %v431
        %v436 = vmul.f32 %v429, %v431
        %v437 = vld [vmem:[%s3] sm:$0xf]
        %v438 = vld [vmem:[%s3 + $0x4] sm:$0xf]
        %v439 = vpack.c.bf16 %v434, %v433
        %v440 = vpack.c.bf16 %v436, %v435
        %v441 = vld [vmem:[%s4] sm:$0xff]
        %v442 = vld [vmem:[%s4 + $0x8] sm:$0xff]
        %444 = vset.pattern.permute.xlu0 0
        %445 = vperm.xlu0 %444, %v441
        %v446 = vpop.permute.xlu0 %445
        %449 = vset.pattern.permute.xlu0 0
        %450 = vperm.xlu0 %449, %v442
        %v451 = vpop.permute.xlu0 %450
        %v455 = vunpack.c.l.b16 %v437
        %v456 = vunpack.c.l.b16 %v438
        %v457 = vpack.c.b16 %v456, %v455
        %v459 = vsel %vm400, %v457, 0
        %461 = vmatpush.bf16.msra.mxu0 0
        %462 = vmatpush.bf16.msra.mxu0 0
        %463 = vmatpush.bf16.msra.mxu0 0
        %464 = vmatpush.bf16.msra.mxu0 0
        %465 = vmatpush.bf16.msra.mxu0 0
        %466 = vmatpush.bf16.msra.mxu0 0
        %467 = vmatpush.bf16.msra.mxu0 %v440
        %468 = vmatpush.bf16.msra.mxu0 %v439
        %469 = vmatmul.bf16.gmra.mxu0 %v459
        %v470 = vpop.f32.mrf.mxu0
        %v471 = vadd.f32 %v446, %v470
        %v472 = vpop.f32.mrf.mxu0
        %v473 = vadd.f32 %v451, %v472
        %474 = vdwg.mxu0
        %v475 = vmul.f32 %v471, %v431
        %v476 = vmul.f32 %v473, %v431
        %477 = vst [vmem:[%s340] sm:$0xff] %v433
        %478 = vst [vmem:[%s340 + $0x8] sm:$0xff] %v434
        %479 = vst [vmem:[%s340 + $0x10] sm:$0xff] %v435
        %480 = vst [vmem:[%s340 + $0x18] sm:$0xff] %v436
        %481 = vst [vmem:[%s347] sm:$0xff] %v475
        %482 = vst [vmem:[%s347 + $0x8] sm:$0xff] %v476
        %s483 = sand.u32 %s190, 1
        %s484 = scalar_lea.sflag [#allocation4], %s483
        %s485 = sand.u32 %s190, 1
        %s486 = smul.addr %s485, 32
        %s487 = scalar_lea.vmem [#allocation5], %s486
        %s488 = sand.u32 %s218, 1
        %s489 = scalar_lea.sflag [#allocation7], %s488
        %s490 = sand.u32 %s218, 1
        %s491 = smul.addr %s490, 16
        %s492 = scalar_lea.vmem [#allocation6], %s491
        // Predicated region
        $region49: #{tpu_custom_call.1} parent=43 // pred_check
          %p493 = pneg %p200
        $region50: #{tpu_custom_call.1} parent=43 // pred_check_branch
          %495 = sbr.rel (%p493) target = $region52
        $region51: #{tpu_custom_call.1} parent=43 // pred_region
          %497 = vsyncadd %s484, 0
          %s498 = smul.addr %s32, 4
          %s499 = sadd.s32 %s33, %s498
          %s500 = smul.addr %s499, 8
          %s501 = scalar_lea.hbm %s6, %s500
          %s502 = sshll.u32 %s487, 4
          %s503 = int_to_ptr.vmem [resolvable:$true] %s502
          %s504 = sshll.u32 %s501, 4
          %s505 = int_to_ptr.hbm [resolvable:$true] %s504
          %510 = dma.vmem_to_hbm [thread:$0]  %s503, 512, %s505, %s484, 128, 128, 8
        $region52: #{tpu_custom_call.1} parent=43 // pred_fallthru
          _
        // Predicated region
        $region53: #{tpu_custom_call.1} parent=43 // pred_check
          %p511 = pneg %p228
        $region54: #{tpu_custom_call.1} parent=43 // pred_check_branch
          %513 = sbr.rel (%p511) target = $region56
        $region55: #{tpu_custom_call.1} parent=43 // pred_region
          %515 = vsyncadd %s489, 0
          %s516 = smul.addr %s32, 2
          %s517 = sadd.s32 %s33, %s516
          %s518 = smul.addr %s517, 8
          %s519 = scalar_lea.hbm %s7, %s518
          %s520 = sshll.u32 %s492, 4
          %s521 = int_to_ptr.vmem [resolvable:$true] %s520
          %s522 = sshll.u32 %s519, 4
          %s523 = int_to_ptr.hbm [resolvable:$true] %s522
          %528 = dma.vmem_to_hbm [thread:$0]  %s521, 256, %s523, %s489, 128, 128, 8
        $region56: #{tpu_custom_call.1} parent=43 // pred_fallthru
          _
      $region44: #{tpu_custom_call.1} parent=5 // pred_fallthru
        _
      %p529 = scmp.le.s32.totalorder 2, %s23
      // Predicated region
      $region57: #{tpu_custom_call.1} parent=5 // pred_check
        %p530 = pneg %p529
      $region58: #{tpu_custom_call.1} parent=5 // pred_check_branch
        %532 = sbr.rel (%p530) target = $region60
      $region59: #{tpu_custom_call.1} parent=5 // pred_region
        %s533 = ssub.s32 %s23, 2
        // Predicated region
        $region61: #{tpu_custom_call.1} parent=59 // pred_check
          %p534 = pneg %p206
        $region62: #{tpu_custom_call.1} parent=59 // pred_check_branch
          %536 = sbr.rel (%p534) target = $region64
        $region63: #{tpu_custom_call.1} parent=59 // pred_region
          %s537 = sand.u32 %s191, 1
          %s538 = scalar_lea.sflag [#allocation4], %s537
          %s539 = sand.u32 %s191, 1
          %s540 = smul.addr %s539, 32
          %s541 = scalar_lea.vmem [#allocation5], %s540
          %543 = dma.done %s538, 512
        $region64: #{tpu_custom_call.1} parent=59 // pred_fallthru
          _
        // Predicated region
        $region65: #{tpu_custom_call.1} parent=59 // pred_check
          %p544 = pneg %p234
        $region66: #{tpu_custom_call.1} parent=59 // pred_check_branch
          %546 = sbr.rel (%p544) target = $region68
        $region67: #{tpu_custom_call.1} parent=59 // pred_region
          %s547 = sand.u32 %s219, 1
          %s548 = scalar_lea.sflag [#allocation7], %s547
          %s549 = sand.u32 %s219, 1
          %s550 = smul.addr %s549, 16
          %s551 = scalar_lea.vmem [#allocation6], %s550
          %553 = dma.done %s548, 256
        $region68: #{tpu_custom_call.1} parent=59 // pred_fallthru
          _
      $region60: #{tpu_custom_call.1} parent=5 // pred_fallthru
        _
    $region6: #{tpu_custom_call.1} parent=1 // loop_footer
      %s27 = sadd.s32 1, %s23
    $region7: #{tpu_custom_call.1} parent=1 // loop_footer_branch
      %22 = sbr.rel target = $region3
    $region8: #{tpu_custom_call.1} parent=1 // loop_exit
      _
    %554 = vsyncpa [#allocation3], 1
    %s555 = scalar_lea.sflag [#allocation3], 1
    %556 = vsyncpa %s555, 1
    %557 = vsyncpa [#allocation4], 1
    %s558 = scalar_lea.sflag [#allocation4], 1
    %559 = vsyncpa %s558, 1
    %560 = vsyncpa [#allocation7], 1
    %s561 = scalar_lea.sflag [#allocation7], 1
    %562 = vsyncpa %s561, 1

</llo_original>
